<compile_context>
chip_gen: v5e
topology: v5e:2x2
jax: 0.10.0
libtpu: 0.0.40
codegen_flags: <defaults>
</compile_context>

<pallas_src>
import functools

import jax
import jax.numpy as jnp
from jax.experimental import pallas as pl
from jax.experimental.pallas import tpu as pltpu

# Transforms supported in-kernel (subset of BaseDistribution.predefined_transforms).
_SUPPORTED_TRANSFORMS = (
    "none", "positive", "exp", "square", "sqrt", "log", "probabilities"
)

# Target VMEM bytes for one block. BlockSpec double-buffers input + output,
# so VMEM use is ~4x this; 4 MiB keeps us inside v7x's 32 MiB scoped default.
_TARGET_BLOCK_BYTES = 4 * 1024 * 1024


def _make_kernel(transform_names, F):
    """Build a kernel specialized (at trace time) to the static transform list."""

    def kernel(x_ref, o_ref):
        # Block is (TB, P*F); parameter p lives in lanes [p*F, (p+1)*F).
        for p, name in enumerate(transform_names):
            sl = slice(p * F, (p + 1) * F)  # static, lane-aligned when F % 128 == 0
            x = x_ref[:, sl]
            if name == "none":
                y = x
            elif name == "positive":
                y = jnp.logaddexp(x, 0.0)          # softplus, numerically stable
            elif name == "exp":
                y = jnp.exp(x)
            elif name == "square":
                y = x * x
            elif name == "sqrt":
                y = jnp.sqrt(x)
            elif name == "log":
                y = jnp.log(x + 1e-6)
            elif name == "probabilities":          # softmax over the feature axis
                xf = x.astype(jnp.float32)
                m = jnp.max(xf, axis=-1, keepdims=True)
                e = jnp.exp(xf - m)
                y = e / jnp.sum(e, axis=-1, keepdims=True)
            else:
                # 'sort' (cumsum of softplus) and custom callables fall back to identity.
                # TODO(synk): implement 'sort' via a lane-axis cumulative sum if required.
                y = x
            o_ref[:, sl] = y.astype(o_ref.dtype)

    return kernel


def _choose_batch_tile(B, P, F, dtype):
    """Largest batch tile (multiple of 8) that keeps the block ~_TARGET_BLOCK_BYTES."""
    row_bytes = P * F * jnp.dtype(dtype).itemsize
    max_rows = max(8, (_TARGET_BLOCK_BYTES // max(row_bytes, 1)) // 8 * 8)
    if B <= max_rows:
        return B
    tb = max_rows
    while tb > 8 and B % tb:
        tb -= 8
    return tb


@functools.partial(
    jax.jit, static_argnames=("transform_names",), donate_argnums=(0,)
)
def base_distribution_forward(predictions, transform_names):
    """Pallas implementation of BaseDistribution.forward.

    Args:
      predictions: (B, P, F) float array of raw predicted parameters (donated;
        the kernel writes the result in place via input_output_aliases).
      transform_names: tuple of P transform-name strings (static).

    Returns:
      (B, P, F) array of transformed parameters.
    """
    B, P, F = predictions.shape
    assert len(transform_names) == P

    # Collapse trailing dims: (B, P, F) -> (B, P*F). Free (bitcast) for a
    # contiguous array and keeps the last (lane) axis dense and wide.
    x = predictions.reshape(B, P * F)

    tb = _choose_batch_tile(B, P, F, predictions.dtype)
    grid = (pl.cdiv(B, tb),)

    out = pl.pallas_call(
        _make_kernel(tuple(transform_names), F),
        out_shape=jax.ShapeDtypeStruct((B, P * F), predictions.dtype),
        grid=grid,
        in_specs=[pl.BlockSpec((tb, P * F), lambda i: (i, 0))],
        out_specs=pl.BlockSpec((tb, P * F), lambda i: (i, 0)),
        input_output_aliases={0: 0},  # elementwise: write result in place
        compiler_params=pltpu.CompilerParams(
            dimension_semantics=("parallel",)  # batch-tile axis -> megacore on v7x
        ),
    )(x)

    return out.reshape(B, P, F)


def _reference_forward(predictions, transform_names):
    """Pure-JAX reference matching the PyTorch forward."""
    outs = []
    for idx, name in enumerate(transform_names):
        x = predictions[:, idx]
        if name == "none":
            y = x
        elif name == "positive":
            y = jax.nn.softplus(x)
        elif name == "exp":
            y = jnp.exp(x)
        elif name == "square":
            y = x * x
        elif name == "sqrt":
            y = jnp.sqrt(x)
        elif name == "log":
            y = jnp.log(x + 1e-6)
        elif name == "probabilities":
            y = jax.nn.softmax(x, axis=-1)
        else:
            y = x
        outs.append(y[:, None])
    return jnp.concatenate(outs, axis=1)


if __name__ == "__main__":
    # Deterministic "module setup": a 4-parameter distribution.
    param_names = ("loc", "scale", "rate", "weight")
    transform_names = ("none", "positive", "exp", "square")

    B, P, F = 8, len(param_names), 128
    key = jax.random.PRNGKey(0)
    predictions = jax.random.normal(key, (B, P, F), dtype=jnp.float32)

    # Reference first: the kernel call donates `predictions` (in-place update).
    ref = _reference_forward(predictions, transform_names)

    out = base_distribution_forward(predictions, transform_names)
    out = jax.block_until_ready(out)

    assert out.shape == (B, P, F)
    assert jnp.allclose(out, ref, atol=1e-5, rtol=1e-5)

    print("KERNEL_OK")
</pallas_src>

<mosaic_0001>
module attributes {stable_mosaic.version = 11 : i64} {
  func.func @kernel(%arg0: i32, %arg1: memref<8x512xf32, #tpu.memory_space<vmem>>, %arg2: memref<8x512xf32, #tpu.memory_space<vmem>>) attributes {dimension_semantics = [#tpu.dimension_semantics<parallel>], iteration_bounds = array<i64: 1>, scalar_prefetch = 0 : i64, scratch_operands = 0 : i64, tpu.core_type = #tpu.core_type<tc>, window_params = [{transform_indices = @transform_0, window_bounds = array<i64: 8, 512>}, {transform_indices = @transform_1, window_bounds = array<i64: 8, 512>}]} {
    %c0 = arith.constant 0 : index
    %c0_0 = arith.constant 0 : index
    %0 = vector.load %arg1[%c0, %c0_0] : memref<8x512xf32, #tpu.memory_space<vmem>>, vector<8x128xf32>
    %c0_1 = arith.constant 0 : index
    %c0_2 = arith.constant 0 : index
    %1 = vector.load %arg2[%c0_1, %c0_2] : memref<8x512xf32, #tpu.memory_space<vmem>>, vector<8x128xf32>
    tpu.vector_store %arg2[%c0_1, %c0_2], %0 {strides = array<i32>} : memref<8x512xf32, #tpu.memory_space<vmem>>, vector<8x128xf32>,
    %c0_3 = arith.constant 0 : index
    %c128 = arith.constant 128 : index
    %2 = vector.load %arg1[%c0_3, %c128] : memref<8x512xf32, #tpu.memory_space<vmem>>, vector<8x128xf32>
    %cst = arith.constant 0.000000e+00 : f32
    %3 = vector.broadcast %cst : f32 to vector<8x128xf32>
    %4 = arith.maximumf %2, %3 : vector<8x128xf32>
    %5 = vector.broadcast %cst : f32 to vector<8x128xf32>
    %6 = arith.subf %2, %5 : vector<8x128xf32>
    %7 = arith.cmpf one, %6, %6 : vector<8x128xf32>
    %8 = vector.broadcast %cst : f32 to vector<8x128xf32>
    %9 = arith.addf %2, %8 : vector<8x128xf32>
    %10 = math.absf %6 : vector<8x128xf32>
    %cst_4 = arith.constant 0.000000e+00 : f32
    %11 = vector.broadcast %cst_4 : f32 to vector<8x128xf32>
    %12 = arith.subf %11, %10 : vector<8x128xf32>
    %13 = math.exp %12 : vector<8x128xf32>
    %14 = math.log1p %13 : vector<8x128xf32>
    %15 = arith.addf %4, %14 : vector<8x128xf32>
    %16 = arith.select %7, %9, %15 : vector<8x128xi1>, vector<8x128xf32>
    %c0_5 = arith.constant 0 : index
    %c128_6 = arith.constant 128 : index
    %17 = vector.load %arg2[%c0_5, %c128_6] : memref<8x512xf32, #tpu.memory_space<vmem>>, vector<8x128xf32>
    tpu.vector_store %arg2[%c0_5, %c128_6], %16 {strides = array<i32>} : memref<8x512xf32, #tpu.memory_space<vmem>>, vector<8x128xf32>,
    %c0_7 = arith.constant 0 : index
    %c256 = arith.constant 256 : index
    %18 = vector.load %arg1[%c0_7, %c256] : memref<8x512xf32, #tpu.memory_space<vmem>>, vector<8x128xf32>
    %19 = math.exp %18 : vector<8x128xf32>
    %c0_8 = arith.constant 0 : index
    %c256_9 = arith.constant 256 : index
    %20 = vector.load %arg2[%c0_8, %c256_9] : memref<8x512xf32, #tpu.memory_space<vmem>>, vector<8x128xf32>
    tpu.vector_store %arg2[%c0_8, %c256_9], %19 {strides = array<i32>} : memref<8x512xf32, #tpu.memory_space<vmem>>, vector<8x128xf32>,
    %c0_10 = arith.constant 0 : index
    %c384 = arith.constant 384 : index
    %21 = vector.load %arg1[%c0_10, %c384] : memref<8x512xf32, #tpu.memory_space<vmem>>, vector<8x128xf32>
    %22 = arith.mulf %21, %21 : vector<8x128xf32>
    %c0_11 = arith.constant 0 : index
    %c384_12 = arith.constant 384 : index
    %23 = vector.load %arg2[%c0_11, %c384_12] : memref<8x512xf32, #tpu.memory_space<vmem>>, vector<8x128xf32>
    tpu.vector_store %arg2[%c0_11, %c384_12], %22 {strides = array<i32>} : memref<8x512xf32, #tpu.memory_space<vmem>>, vector<8x128xf32>,
    return
  }
  func.func @transform_0(%arg0: i32) -> (i32, i32) {
    %c0_i32 = arith.constant 0 : i32
    %c0_i32_0 = arith.constant 0 : i32
    return %arg0, %c0_i32 : i32, i32
  }
  func.func @transform_1(%arg0: i32) -> (i32, i32) {
    %c0_i32 = arith.constant 0 : i32
    %c0_i32_0 = arith.constant 0 : i32
    return %arg0, %c0_i32 : i32, i32
  }
}

</mosaic_0001>

<llo_original>
// kernel: base_distribution_forward.1
$region0: #{base_distribution_forward.1}
  #allocation0 [shape = 'u32[]', space=smem, size = 0x4, offset = 0x4, fixed_abs, tag = 'smem constant byte address 0x4 - core index']
  #allocation1 [shape = 'u32[72,128]{1,0:T(1,128)}', space=vmem, size = 0x9000, scoped, tag = 'internal scratch']
  %s0 = inlined_call_operand.vmem [shape: f32[8,512], index: 0, kind: input, shape index: {}, may-alias: {0,1}]
  %s1 = inlined_call_operand.vmem [shape: f32[8,512], index: 1, kind: output, shape index: {}, may-alias: {0,1}]
  %s2 = sld [smem:[#allocation0]]
  $region14: #{base_distribution_forward.1} parent=0
    _
  %s4 = ssub.s32 1, %s2
  %s5 = scalar_select 0, %s4, %s2
  // Predicated region
  $region2: #{base_distribution_forward.1} parent=0 // pred_check
    _
  $region3: #{base_distribution_forward.1} parent=0 // pred_check_branch
    %7 = sbr.rel (0) target = $region5
  $region4: #{base_distribution_forward.1} parent=0 // pred_region
    _
  $region5: #{base_distribution_forward.1} parent=0 // pred_fallthru
    _
  %v8 = vld [vmem:[%s0] sm:$0xff]
  %9 = vst [vmem:[%s1] sm:$0xff] %v8
  %v10 = vld [vmem:[%s0 + $0x8] sm:$0xff]
  %v11 = vmax.f32 %v10, 0.0
  %vm12 = vcmp.ne.f32.partialorder %v10, %v10
  %v13 = vadd.f32 %v10, 0.0
  %v14 = vand.u32 2147483647, %v10
  %v15 = vsub.f32 0.0, %v14
  %v16 = vmul.f32 %v15, 1.442695
  %v17 = vpow.pop %v16
  %v18 = vadd.f32 %v17, 1.0
  %v19 = vlog2.pop %v18
  %v20 = vmul.f32 %v19, 0.6931472
  %v21 = vmul.f32 -0.5, %v17
  %v22 = vadd.f32 %v21, 1.0
  %v23 = vmul.f32 %v22, %v17
  %v24 = vand.u32 2147483647, %v17
  %vm25 = vcmp.lt.f32.partialorder %v24, 0.0004427343
  %v26 = vsel %vm25, %v23, %v20
  %v27 = vadd.f32 %v11, %v26
  %v28 = vsel %vm12, %v13, %v27
  %29 = vst [vmem:[%s1 + $0x8] sm:$0xff] %v28
  %v30 = vld [vmem:[%s0 + $0x10] sm:$0xff]
  %v31 = vmul.f32 %v30, 1.442695
  %v32 = vpow.pop %v31
  %33 = vst [vmem:[%s1 + $0x10] sm:$0xff] %v32
  %v34 = vld [vmem:[%s0 + $0x18] sm:$0xff]
  %v35 = vmul.f32 %v34, %v34
  %36 = vst [vmem:[%s1 + $0x18] sm:$0xff] %v35
  // Predicated region
  $region6: #{base_distribution_forward.1} parent=0 // pred_check
    _
  $region7: #{base_distribution_forward.1} parent=0 // pred_check_branch
    %38 = sbr.rel (0) target = $region9
  $region8: #{base_distribution_forward.1} parent=0 // pred_region
    _
  $region9: #{base_distribution_forward.1} parent=0 // pred_fallthru
    _
  // Predicated region
  $region10: #{base_distribution_forward.1} parent=0 // pred_check
    _
  $region11: #{base_distribution_forward.1} parent=0 // pred_check_branch
    %40 = sbr.rel (0) target = $region13
  $region12: #{base_distribution_forward.1} parent=0 // pred_region
    _
  $region13: #{base_distribution_forward.1} parent=0 // pred_fallthru
    _

</llo_original>
